<compile_context>
chip_gen: v5e
topology: v5e:2x2
jax: 0.10.0
libtpu: 0.0.40
codegen_flags: <defaults>
</compile_context>

<pallas_src>
import functools

import jax
import jax.numpy as jnp
from jax.experimental import pallas as pl
from jax.experimental.pallas import tpu as pltpu


def _round_up(x, m):
    return ((x + m - 1) // m) * m


def _vmem_budgets():
    """Generation-dependent VMEM sizing (v5e/v6e: 128 MiB, v7x: 64 MiB)."""
    try:
        cap = int(pltpu.get_tpu_info().vmem_capacity_bytes)
    except Exception:
        cap = 64 * 1024 * 1024          # conservative (v7x-sized) default
    vmem_limit = (cap * 3) // 4         # 96 MiB on v5e/v6e, 48 MiB on v7x
    fused_budget = cap // 2             # 64 MiB on v5e/v6e, 32 MiB on v7x
    return fused_budget, vmem_limit


def _pick_batch_tile(b):
    """Whole (8-rounded) batch when tiny; else 128/256 so the parallel batch
    axis has >= 2 grid steps (both v7x TCs busy, bounded vreg pressure)."""
    if b <= 128:
        return _round_up(max(b, 1), 8)
    if b <= 1024:
        return 128
    return 256


def _pick_tile(dim_p, candidates):
    """Largest candidate tile that evenly divides the (128-padded) dim."""
    for c in candidates:
        if dim_p % c == 0:
            return c
    return dim_p


def _spec(block_shape, index_map, buffers=None):
    """BlockSpec with an optional explicit pipeline depth (graceful fallback
    to the default double-buffering if pipeline_mode is unsupported)."""
    if buffers is not None:
        try:
            return pl.BlockSpec(block_shape, index_map,
                                pipeline_mode=pl.Buffered(buffers))
        except Exception:
            pass
    return pl.BlockSpec(block_shape, index_map)


# ---------------------------------------------------------------------------
# Fused whole-stack kernel: one grid step = one batch tile through all layers.
# Activations never leave VMEM/registers between layers.
# ---------------------------------------------------------------------------
def _fused_stack_kernel(*refs, n_layers, apply_acts):
    x_ref = refs[0]
    o_ref = refs[-1]
    h_bf16 = x_ref[...]                              # bf16 activation tile
    h = None
    for i in range(n_layers):
        w = refs[1 + 2 * i][...]                     # bf16 [in_p, out_p]
        b = refs[2 + 2 * i][...]                     # f32  [1, out_p]
        y = jnp.dot(h_bf16, w, preferred_element_type=jnp.float32) + b
        if apply_acts[i]:
            y = jnp.maximum(y, 0.2 * y)              # LeakyReLU(0.2), one vmax
        h = y
        if i + 1 < n_layers:
            h_bf16 = y.astype(jnp.bfloat16)
    o_ref[...] = h.astype(o_ref.dtype)


def _projection_fused(x_p, params, apply_acts, *, tm, out_dtype, vmem_limit):
    """Run the whole padded layer stack in a single pallas_call."""
    B_p, IN_p = x_p.shape
    OUT_p = params[-1][0].shape[1]
    n_layers = len(params)

    in_specs = [pl.BlockSpec((tm, IN_p), lambda i: (i, 0))]
    inputs = [x_p]
    for (w, b) in params:
        in_p, out_p = w.shape
        # Grid-invariant weights/biases: single-buffered (fetched once).
        in_specs.append(_spec((in_p, out_p), lambda i: (0, 0), buffers=1))
        in_specs.append(_spec((1, out_p), lambda i: (0, 0), buffers=1))
        inputs.extend([w, b])

    grid = (B_p // tm,)
    flops = 2 * B_p * sum(int(w.shape[0]) * int(w.shape[1]) for w, _ in params)
    wb_bytes = sum(int(w.size) * 2 + int(b.size) * 4 for w, b in params)
    out_bytes = B_p * int(OUT_p) * jnp.dtype(out_dtype).itemsize
    # Weights with a constant index_map are fetched once, not per grid step.
    bytes_accessed = int(x_p.size) * 2 + out_bytes + wb_bytes

    kernel = functools.partial(
        _fused_stack_kernel, n_layers=n_layers, apply_acts=tuple(apply_acts))

    return pl.pallas_call(
        kernel,
        out_shape=jax.ShapeDtypeStruct((B_p, OUT_p), out_dtype),
        grid=grid,
        in_specs=in_specs,
        out_specs=pl.BlockSpec((tm, OUT_p), lambda i: (i, 0)),
        compiler_params=pltpu.CompilerParams(
            dimension_semantics=("parallel",),
            vmem_limit_bytes=int(vmem_limit),
        ),
        cost_estimate=pl.CostEstimate(
            flops=int(flops), transcendentals=0,
            bytes_accessed=int(bytes_accessed)),
    )(*inputs)


# ---------------------------------------------------------------------------
# Tiled per-layer fallback (large stacks): classic accumulator matmul.
# ---------------------------------------------------------------------------
def _tiled_linear_kernel(x_ref, w_ref, b_ref, o_ref, acc_ref, *, apply_act):
    k = pl.program_id(2)

    @pl.when(k == 0)
    def _():
        acc_ref[...] = jnp.zeros_like(acc_ref)

    acc_ref[...] += jnp.dot(x_ref[...].astype(jnp.bfloat16), w_ref[...],
                            preferred_element_type=jnp.float32)

    @pl.when(k == pl.num_programs(2) - 1)
    def _():
        y = acc_ref[...] + b_ref[...]
        if apply_act:
            y = jnp.maximum(y, 0.2 * y)
        o_ref[...] = y.astype(o_ref.dtype)


def _pallas_linear_tiled(x, w, b, *, apply_act, out_dtype, tm, vmem_limit):
    """y = x @ w + b (+ optional LeakyReLU), tiled over (B, OUT, IN)."""
    B_p, IN_p = x.shape
    IN_p2, OUT_p = w.shape
    assert IN_p == IN_p2 and b.shape == (1, OUT_p)

    tk = _pick_tile(IN_p, (1024, 512, 256, 128))
    tn = _pick_tile(OUT_p, (512, 256, 128))
    grid = (B_p // tm, OUT_p // tn, IN_p // tk)

    kernel = functools.partial(_tiled_linear_kernel, apply_act=apply_act)
    return pl.pallas_call(
        kernel,
        out_shape=jax.ShapeDtypeStruct((B_p, OUT_p), out_dtype),
        grid=grid,
        in_specs=[
            pl.BlockSpec((tm, tk), lambda i, j, k: (i, k)),
            pl.BlockSpec((tk, tn), lambda i, j, k: (k, j)),
            pl.BlockSpec((1, tn), lambda i, j, k: (0, j)),
        ],
        out_specs=pl.BlockSpec((tm, tn), lambda i, j, k: (i, j)),
        scratch_shapes=[pltpu.VMEM((tm, tn), jnp.float32)],
        compiler_params=pltpu.CompilerParams(
            dimension_semantics=("parallel", "parallel", "arbitrary"),
            vmem_limit_bytes=int(vmem_limit),
        ),
    )(x, w, b)


# ---------------------------------------------------------------------------
# Module wrapper
# ---------------------------------------------------------------------------
def xavier_normal(key, shape, dtype=jnp.float32):
    """torch.nn.init.xavier_normal_ for a Linear weight of shape [out, in]."""
    fan_out, fan_in = shape
    std = (2.0 / (fan_in + fan_out)) ** 0.5
    return std * jax.random.normal(key, shape, dtype=dtype)


class Projection:
    """JAX/Pallas port of the PyTorch Projection module."""

    def __init__(self, key, in_planes, out_planes=None, n_layers=1,
                 layer_type=0, force_tiled=False):
        if out_planes is None:
            out_planes = in_planes
        self.in_planes = in_planes
        self.out_planes = out_planes
        self.n_layers = n_layers
        self.layer_type = layer_type
        self.force_tiled = force_tiled
        self.in_pad = _round_up(in_planes, 128)
        self.apply_acts = tuple(
            (i < n_layers - 1) and (layer_type > 1) for i in range(n_layers))

        self.params = []
        _out = None
        for i in range(n_layers):
            _in = in_planes if i == 0 else _out
            _out = out_planes
            in_p = _round_up(_in, 128)
            out_p = _round_up(_out, 128)
            key, wkey, bkey = jax.random.split(key, 3)
            # PyTorch Linear weight is [out, in]; init_weight applies
            # xavier_normal_. Bias keeps PyTorch's default
            # U(-1/sqrt(fan_in), 1/sqrt(fan_in)) init.
            w_pt = xavier_normal(wkey, (_out, _in))
            bound = 1.0 / (_in ** 0.5)
            bias = jax.random.uniform(bkey, (_out,), minval=-bound, maxval=bound)
            # Store transposed [in, out], zero-padded to 128 multiples; weights
            # in bf16 (MXU feed), bias in f32 (epilogue stays f32).
            w_t = jnp.transpose(w_pt)
            w_p = (jnp.zeros((in_p, out_p), jnp.float32)
                   .at[:_in, :_out].set(w_t).astype(jnp.bfloat16))
            b_p = jnp.zeros((1, out_p), jnp.float32).at[0, :_out].set(bias)
            self.params.append((w_p, b_p))

    def __call__(self, x):
        B, IN = x.shape
        assert IN == self.in_planes
        out_dtype = x.dtype
        tm = _pick_batch_tile(B)
        B_p = _round_up(B, tm)

        # The MXU is fed in bf16 anyway; pad+cast once. Skip the pad copy
        # entirely when the shapes are already aligned.
        if B_p == B and self.in_pad == IN:
            x_p = x.astype(jnp.bfloat16)
        else:
            x_p = (jnp.zeros((B_p, self.in_pad), jnp.bfloat16)
                   .at[:B, :IN].set(x.astype(jnp.bfloat16)))

        fused_budget, vmem_limit = _vmem_budgets()
        OUT_p = int(self.params[-1][0].shape[1])
        max_feat = max([self.in_pad] + [int(w.shape[1]) for w, _ in self.params])
        wb_bytes = sum(int(w.size) * 2 + int(b.size) * 4 for w, b in self.params)
        # Single-buffered weights + double-buffered in/out tiles + live f32/bf16
        # working set of the widest layer inside the kernel body.
        est = (wb_bytes
               + 2 * tm * self.in_pad * 2
               + 2 * tm * OUT_p * jnp.dtype(out_dtype).itemsize
               + 3 * tm * max_feat * 4)
        use_fused = (not self.force_tiled) and est <= fused_budget

        if use_fused:
            y_p = _projection_fused(x_p, self.params, self.apply_acts,
                                    tm=tm, out_dtype=out_dtype,
                                    vmem_limit=vmem_limit)
        else:
            # TODO(synk): add a streamed-weight middle path (activation resident
            # in VMEM scratch, weights pipelined from HBM via emit_pipeline) to
            # avoid per-layer activation HBM round-trips on very large stacks.
            h = x_p
            for li, ((w, b), act) in enumerate(zip(self.params, self.apply_acts)):
                last = (li == len(self.params) - 1)
                h = _pallas_linear_tiled(
                    h, w, b, apply_act=act,
                    out_dtype=(out_dtype if last else jnp.bfloat16),
                    tm=tm, vmem_limit=vmem_limit)
            y_p = h
        return y_p[:B, :self.out_planes]

    def reference(self, x):
        """Plain-JAX reference mirroring the kernel's bf16-feed math."""
        B, IN = x.shape
        h = (jnp.zeros((B, self.in_pad), jnp.float32)
             .at[:, :IN].set(x.astype(jnp.float32)))
        for (w, b), act in zip(self.params, self.apply_acts):
            hb = h.astype(jnp.bfloat16).astype(jnp.float32)
            y = hb @ w.astype(jnp.float32) + b
            if act:
                y = jnp.maximum(y, 0.2 * y)
            h = y
        return h[:, :self.out_planes].astype(x.dtype)


if __name__ == "__main__":
    key = jax.random.PRNGKey(0)
    key, xkey, mkey1, mkey2, mkey3, xkey3 = jax.random.split(key, 6)

    batch, in_planes, out_planes = 8, 32, 32
    x = jax.random.normal(xkey, (batch, in_planes), dtype=jnp.float32)

    # Config 1: default Projection (n_layers=1, layer_type=0) -> single Linear.
    proj1 = Projection(mkey1, in_planes, out_planes, n_layers=1, layer_type=0)
    y1 = proj1(x)
    jax.block_until_ready(y1)
    assert y1.shape == (batch, out_planes)
    assert jnp.allclose(y1, proj1.reference(x), atol=1e-2, rtol=1e-2)

    # Config 2: fused 3-layer stack with LeakyReLU(0.2) between layers.
    proj2 = Projection(mkey2, in_planes, out_planes, n_layers=3, layer_type=2)
    y2 = proj2(x)
    jax.block_until_ready(y2)
    assert y2.shape == (batch, out_planes)
    assert jnp.allclose(y2, proj2.reference(x), atol=1e-2, rtol=1e-2)

    # Config 3: exercise the tiled (accumulator-grid) fallback path explicitly.
    x3 = jax.random.normal(xkey3, (8, 256), dtype=jnp.float32)
    proj3 = Projection(mkey3, 256, 384, n_layers=2, layer_type=2,
                       force_tiled=True)
    y3 = proj3(x3)
    jax.block_until_ready(y3)
    assert y3.shape == (8, 384)
    assert jnp.allclose(y3, proj3.reference(x3), atol=1e-2, rtol=1e-2)

    print("KERNEL_OK")
</pallas_src>

<mosaic_0001>
module attributes {stable_mosaic.version = 11 : i64} {
  func.func @_fused_stack_kernel(%arg0: i32, %arg1: memref<8x128xbf16, #tpu.memory_space<vmem>>, %arg2: memref<128x128xbf16, #tpu.memory_space<vmem>>, %arg3: memref<1x128xf32, #tpu.memory_space<vmem>>, %arg4: memref<8x128xf32, #tpu.memory_space<vmem>>) attributes {dimension_semantics = [#tpu.dimension_semantics<parallel>], iteration_bounds = array<i64: 1>, scalar_prefetch = 0 : i64, scratch_operands = 0 : i64, tpu.core_type = #tpu.core_type<tc>, window_params = [{transform_indices = @transform_0, window_bounds = array<i64: 8, 128>}, {pipeline_mode = #tpu.pipeline_mode<synchronous>, transform_indices = @transform_1, window_bounds = array<i64: 128, 128>}, {pipeline_mode = #tpu.pipeline_mode<synchronous>, transform_indices = @transform_2, window_bounds = array<i64: 1, 128>}, {transform_indices = @transform_3, window_bounds = array<i64: 8, 128>}]} {
    %c0 = arith.constant 0 : index
    %c0_0 = arith.constant 0 : index
    %0 = vector.load %arg1[%c0, %c0_0] : memref<8x128xbf16, #tpu.memory_space<vmem>>, vector<8x128xbf16>
    %c0_1 = arith.constant 0 : index
    %c0_2 = arith.constant 0 : index
    %1 = vector.load %arg2[%c0_1, %c0_2] : memref<128x128xbf16, #tpu.memory_space<vmem>>, vector<128x128xbf16>
    %c0_3 = arith.constant 0 : index
    %c0_4 = arith.constant 0 : index
    %2 = vector.load %arg3[%c0_3, %c0_4] : memref<1x128xf32, #tpu.memory_space<vmem>>, vector<1x128xf32>
    %cst = arith.constant dense<0.000000e+00> : vector<8x128xf32>
    %3 = tpu.matmul %0, %1, %cst {dimension_numbers = #tpu.dot_dimension_numbers<[1], [0], [0], [1], [0, 0, 1, 1], [], []>} : vector<8x128xbf16>, vector<128x128xbf16>, vector<8x128xf32> -> vector<8x128xf32>
    %4 = vector.broadcast %2 : vector<1x128xf32> to vector<8x128xf32>
    %5 = arith.addf %3, %4 : vector<8x128xf32>
    %c0_5 = arith.constant 0 : index
    %c0_6 = arith.constant 0 : index
    %6 = vector.load %arg4[%c0_5, %c0_6] : memref<8x128xf32, #tpu.memory_space<vmem>>, vector<8x128xf32>
    tpu.vector_store %arg4[%c0_5, %c0_6], %5 {strides = array<i32>} : memref<8x128xf32, #tpu.memory_space<vmem>>, vector<8x128xf32>,
    return
  }
  func.func @transform_0(%arg0: i32) -> (i32, i32) {
    %c0_i32 = arith.constant 0 : i32
    %c0_i32_0 = arith.constant 0 : i32
    return %arg0, %c0_i32 : i32, i32
  }
  func.func @transform_1(%arg0: i32) -> (i32, i32) {
    %c0_i32 = arith.constant 0 : i32
    %c0_i32_0 = arith.constant 0 : i32
    %c0_i32_1 = arith.constant 0 : i32
    return %c0_i32, %c0_i32_0 : i32, i32
  }
  func.func @transform_2(%arg0: i32) -> (i32, i32) {
    %c0_i32 = arith.constant 0 : i32
    %c0_i32_0 = arith.constant 0 : i32
    %c0_i32_1 = arith.constant 0 : i32
    return %c0_i32, %c0_i32_0 : i32, i32
  }
  func.func @transform_3(%arg0: i32) -> (i32, i32) {
    %c0_i32 = arith.constant 0 : i32
    %c0_i32_0 = arith.constant 0 : i32
    return %arg0, %c0_i32 : i32, i32
  }
}

</mosaic_0001>

<llo_original>
// kernel: tpu_custom_call.1
$region0: #{tpu_custom_call.1}
  #allocation0 [shape = 'u32[]', space=smem, size = 0x4, offset = 0x4, fixed_abs, tag = 'smem constant byte address 0x4 - core index']
  #allocation1 [shape = 'u32[72,128]{1,0:T(1,128)}', space=vmem, size = 0x9000, scoped, tag = 'internal scratch']
  %s0 = inlined_call_operand.hbm [shape: bf16[8,128], index: 0, kind: input, shape index: {}]
  %s1 = inlined_call_operand.hbm [shape: bf16[128,128], index: 1, kind: input, shape index: {}]
  %s2 = inlined_call_operand.vmem [shape: f32[1,128], index: 2, kind: input, shape index: {}]
  %s3 = inlined_call_operand.hbm [shape: f32[8,128], index: 3, kind: output, shape index: {}]
  %s4 = sld [smem:[#allocation0]]
  $region30: #{tpu_custom_call.1} parent=0
    _
  %s6 = ssub.s32 1, %s4
  %s7 = scalar_select 0, %s6, %s4
  $region1: #{tpu_custom_call.1} parent=0
    #allocation2 [shape = 'u8[2048]{0}', space=vmem, size = 0x800, scoped, tag = 'input window, operand 0, single buffered']
    #allocation3 [shape = 's32[1]{0}', space=sflag, size = 0x4, scoped, tag = 'scoped memory for tpu_custom_call.1']
    #allocation4 [shape = 's32[1]{0}', space=sflag, size = 0x4, scoped, tag = 'scoped memory for tpu_custom_call.1']
    #allocation5 [shape = 'u8[32768]{0}', space=vmem, size = 0x8000, scoped, tag = 'input window, operand 1, single buffered']
    #allocation6 [shape = 's32[1]{0}', space=sflag, size = 0x4, scoped, tag = 'scoped memory for tpu_custom_call.1']
    #allocation7 [shape = 'u8[4096]{0}', space=vmem, size = 0x1000, scoped, tag = 'output window, operand 0, single buffered']
    %8 = vsyncpa [#allocation3], 0
    %9 = vsyncpa [#allocation6], 0
    %10 = vsyncpa [#allocation4], 0
    // Predicated region
    $region2: #{tpu_custom_call.1} parent=1 // pred_check
      _
    $region3: #{tpu_custom_call.1} parent=1 // pred_check_branch
      %12 = sbr.rel (0) target = $region5
    $region4: #{tpu_custom_call.1} parent=1 // pred_region
      %14 = vsyncadd [#allocation3], 0
      %s16 = sshll.u32 %s0, 4
      %s17 = int_to_ptr.hbm [resolvable:$true] %s16
      %s18 = sshll.u32 [#allocation2], 4
      %s19 = int_to_ptr.vmem [resolvable:$true] %s18
      %21 = dma.hbm_to_vmem [thread:$0]  %s17, 64, %s19, [#allocation3]
    $region5: #{tpu_custom_call.1} parent=1 // pred_fallthru
      _
    // Predicated region
    $region6: #{tpu_custom_call.1} parent=1 // pred_check
      _
    $region7: #{tpu_custom_call.1} parent=1 // pred_check_branch
      %23 = sbr.rel (0) target = $region9
    $region8: #{tpu_custom_call.1} parent=1 // pred_region
      %25 = vsyncadd [#allocation6], 0
      %s26 = sshll.u32 %s1, 4
      %s27 = int_to_ptr.hbm [resolvable:$true] %s26
      %s28 = sshll.u32 [#allocation5], 4
      %s29 = int_to_ptr.vmem [resolvable:$true] %s28
      %34 = dma.hbm_to_vmem [thread:$0]  %s27, 1024, %s29, [#allocation6], 64, 64, 4
    $region9: #{tpu_custom_call.1} parent=1 // pred_fallthru
      _
    // Predicated region
    $region10: #{tpu_custom_call.1} parent=1 // pred_check
      _
    $region11: #{tpu_custom_call.1} parent=1 // pred_check_branch
      %36 = sbr.rel (0) target = $region13
    $region12: #{tpu_custom_call.1} parent=1 // pred_region
      _
    $region13: #{tpu_custom_call.1} parent=1 // pred_fallthru
      _
    // Predicated region
    $region14: #{tpu_custom_call.1} parent=1 // pred_check
      _
    $region15: #{tpu_custom_call.1} parent=1 // pred_check_branch
      %38 = sbr.rel (0) target = $region17
    $region16: #{tpu_custom_call.1} parent=1 // pred_region
      %40 = dma.done [#allocation3], 64
    $region17: #{tpu_custom_call.1} parent=1 // pred_fallthru
      _
    // Predicated region
    $region18: #{tpu_custom_call.1} parent=1 // pred_check
      _
    $region19: #{tpu_custom_call.1} parent=1 // pred_check_branch
      %42 = sbr.rel (0) target = $region21
    $region20: #{tpu_custom_call.1} parent=1 // pred_region
      %44 = dma.done [#allocation6], 1024
    $region21: #{tpu_custom_call.1} parent=1 // pred_fallthru
      _
    %v45 = vld [vmem:[#allocation2] sm:$0xf]
    %v46 = vld [vmem:[#allocation5] sm:$0xf]
    %v47 = vld [vmem:[#allocation5 + $0x4] sm:$0xf]
    %v48 = vld [vmem:[#allocation5 + $0x8] sm:$0xf]
    %v49 = vld [vmem:[#allocation5 + $0xc] sm:$0xf]
    %v50 = vld [vmem:[#allocation5 + $0x10] sm:$0xf]
    %v51 = vld [vmem:[#allocation5 + $0x14] sm:$0xf]
    %v52 = vld [vmem:[#allocation5 + $0x18] sm:$0xf]
    %v53 = vld [vmem:[#allocation5 + $0x1c] sm:$0xf]
    %v54 = vld [vmem:[#allocation5 + $0x20] sm:$0xf]
    %v55 = vld [vmem:[#allocation5 + $0x24] sm:$0xf]
    %v56 = vld [vmem:[#allocation5 + $0x28] sm:$0xf]
    %v57 = vld [vmem:[#allocation5 + $0x2c] sm:$0xf]
    %v58 = vld [vmem:[#allocation5 + $0x30] sm:$0xf]
    %v59 = vld [vmem:[#allocation5 + $0x34] sm:$0xf]
    %v60 = vld [vmem:[#allocation5 + $0x38] sm:$0xf]
    %v61 = vld [vmem:[#allocation5 + $0x3c] sm:$0xf]
    %v62 = vld [vmem:[%s2] sm:$0x1]
    %v64 = vperm.slane %v62, 0
    %v82 = vunpack.c.l.b16 %v46
    %v83 = vunpack.c.l.b16 %v47
    %v84 = vunpack.c.l.b16 %v48
    %v85 = vunpack.c.l.b16 %v49
    %v86 = vunpack.c.l.b16 %v50
    %v87 = vunpack.c.l.b16 %v51
    %v88 = vunpack.c.l.b16 %v52
    %v89 = vunpack.c.l.b16 %v53
    %v90 = vunpack.c.l.b16 %v54
    %v91 = vunpack.c.l.b16 %v55
    %v92 = vunpack.c.l.b16 %v56
    %v93 = vunpack.c.l.b16 %v57
    %v94 = vunpack.c.l.b16 %v58
    %v95 = vunpack.c.l.b16 %v59
    %v96 = vunpack.c.l.b16 %v60
    %v97 = vunpack.c.l.b16 %v61
    %v98 = vpack.c.b16 %v83, %v82
    %v99 = vpack.c.b16 %v85, %v84
    %v100 = vpack.c.b16 %v87, %v86
    %v101 = vpack.c.b16 %v89, %v88
    %v102 = vpack.c.b16 %v91, %v90
    %v103 = vpack.c.b16 %v93, %v92
    %v104 = vpack.c.b16 %v95, %v94
    %v105 = vpack.c.b16 %v97, %v96
    %114 = vmatpush.bf16.msra.mxu0 %v105
    %115 = vmatpush.bf16.msra.mxu0 %v104
    %116 = vmatpush.bf16.msra.mxu0 %v103
    %117 = vmatpush.bf16.msra.mxu0 %v102
    %118 = vmatpush.bf16.msra.mxu0 %v101
    %119 = vmatpush.bf16.msra.mxu0 %v100
    %120 = vmatpush.bf16.msra.mxu0 %v99
    %121 = vmatpush.bf16.msra.mxu0 %v98
    %122 = vmatmul.bf16.gmra.mxu0 %v45
    %v123 = vpop.f32.mrf.mxu0
    %v124 = vadd.f32 %v64, %v123
    %v125 = vpop.f32.mrf.mxu0
    %126 = vdwg.mxu0
    %127 = vst [vmem:[#allocation7] sm:$0xff] %v124
    // Predicated region
    $region22: #{tpu_custom_call.1} parent=1 // pred_check
      _
    $region23: #{tpu_custom_call.1} parent=1 // pred_check_branch
      %129 = sbr.rel (0) target = $region25
    $region24: #{tpu_custom_call.1} parent=1 // pred_region
      %131 = vsyncadd [#allocation4], 0
      %s133 = sshll.u32 [#allocation7], 4
      %s134 = int_to_ptr.vmem [resolvable:$true] %s133
      %s135 = sshll.u32 %s3, 4
      %s136 = int_to_ptr.hbm [resolvable:$true] %s135
      %138 = dma.vmem_to_hbm [thread:$0]  %s134, 128, %s136, [#allocation4]
    $region25: #{tpu_custom_call.1} parent=1 // pred_fallthru
      _
    // Predicated region
    $region26: #{tpu_custom_call.1} parent=1 // pred_check
      _
    $region27: #{tpu_custom_call.1} parent=1 // pred_check_branch
      %140 = sbr.rel (0) target = $region29
    $region28: #{tpu_custom_call.1} parent=1 // pred_region
      %142 = dma.done [#allocation4], 128
    $region29: #{tpu_custom_call.1} parent=1 // pred_fallthru
      _
    %143 = vsyncpa [#allocation3], 1
    %144 = vsyncpa [#allocation6], 1
    %145 = vsyncpa [#allocation4], 1

</llo_original>
